<compile_context>
chip_gen: v7x
topology: tpu7x:2x2x1
jax: 0.10.0
libtpu: 0.0.40
codegen_flags: <defaults>
</compile_context>

<pallas_src>
import functools

import jax
import jax.numpy as jnp
from jax.experimental import pallas as pl
from jax.experimental.pallas import tpu as pltpu


def _round_up(n: int, m: int) -> int:
    return ((n + m - 1) // m) * m


def _mlp_kernel(x_ref, w1_ref, b1_ref, w2_ref, b2_ref, w3_ref, b3_ref, o_ref):
    # Three MXU matmuls (bf16 operands, fp32 accumulate) + fp32 VPU bias/ReLU epilogue.
    x = x_ref[...].astype(jnp.bfloat16)
    h1 = jnp.dot(x, w1_ref[...], preferred_element_type=jnp.float32) + b1_ref[...]
    h1 = jnp.maximum(h1, 0.0).astype(jnp.bfloat16)
    h2 = jnp.dot(h1, w2_ref[...], preferred_element_type=jnp.float32) + b2_ref[...]
    h2 = jnp.maximum(h2, 0.0).astype(jnp.bfloat16)
    y = jnp.dot(h2, w3_ref[...], preferred_element_type=jnp.float32) + b3_ref[...]
    o_ref[...] = y.astype(o_ref.dtype)


@jax.jit
def qnetwork_forward(x, w1, b1, w2, b2, w3, b3):
    batch, state_size = x.shape
    hl1 = w1.shape[1]
    hl2 = w2.shape[1]
    action_size = w3.shape[1]

    # ---- Lane-dense output: pad the action dim to a multiple of 128 lanes. ----
    n_pad = _round_up(action_size, 128)
    w3_p = jnp.pad(w3, ((0, 0), (0, n_pad - action_size)))
    b3_p = jnp.pad(b3, ((0, 0), (0, n_pad - action_size)))

    # ---- Batch tile: amortize ~0.35us/grid-step overhead, stay well under VMEM. ----
    # TM=512 -> x tile 512*S*4 B, out tile 512*128*4 B = 256 KiB (x2 for double-buffer),
    # plus two lane-padded fp32 intermediates (512*128*4 B each): << 32 MiB scoped VMEM
    # on every generation (v5e/v6e/v7x).
    tm = min(512, _round_up(batch, 8))
    b_pad = _round_up(batch, tm)
    x_p = x if b_pad == batch else jnp.pad(x, ((0, b_pad - batch), (0, 0)))

    # ---- bf16 MXU operands (weights); biases stay fp32 for the VPU epilogue. ----
    w1b = w1.astype(jnp.bfloat16)
    w2b = w2.astype(jnp.bfloat16)
    w3b = w3_p.astype(jnp.bfloat16)

    grid = (b_pad // tm,)

    flops = 2 * b_pad * (state_size * hl1 + hl1 * hl2 + hl2 * n_pad)
    bytes_accessed = (
        b_pad * state_size * 4            # x read (fp32)
        + (w1b.size + w2b.size + w3b.size) * 2   # bf16 weights
        + (b1.size + b2.size + b3_p.size) * 4    # fp32 biases
        + b_pad * n_pad * 4               # padded output write
    )
    cost = pl.CostEstimate(flops=flops, transcendentals=0, bytes_accessed=bytes_accessed)

    batch_tiled = lambda i: (i, 0)   # x / out: walk the batch axis
    resident = lambda i: (0, 0)      # weights / biases: same block every step (stay in VMEM)

    out_padded = pl.pallas_call(
        _mlp_kernel,
        out_shape=jax.ShapeDtypeStruct((b_pad, n_pad), jnp.float32),
        grid=grid,
        in_specs=[
            pl.BlockSpec((tm, state_size), batch_tiled),
            pl.BlockSpec((state_size, hl1), resident),
            pl.BlockSpec((1, hl1), resident),
            pl.BlockSpec((hl1, hl2), resident),
            pl.BlockSpec((1, hl2), resident),
            pl.BlockSpec((hl2, n_pad), resident),
            pl.BlockSpec((1, n_pad), resident),
        ],
        out_specs=pl.BlockSpec((tm, n_pad), batch_tiled),
        compiler_params=pltpu.CompilerParams(
            dimension_semantics=("parallel",),
        ),
        cost_estimate=cost,
    )(x_p, w1b, b1, w2b, b2, w3b, b3_p)

    # Strip batch padding and the lane padding on the action dim.
    return out_padded[:batch, :action_size]


def init_qnetwork_params(key, state_size, action_size, hl1, hl2):
    """Deterministic init mimicking PyTorch nn.Linear (uniform +/- 1/sqrt(fan_in)).

    Weights are returned as [in, out] (transposed relative to torch's [out, in] storage)
    so the kernel computes x @ W + b. Biases are kept 2-D [1, out] for a clean
    (sublane, lane) TPU layout.
    """
    def linear(k, fan_in, fan_out):
        kw, kb = jax.random.split(k)
        bound = 1.0 / jnp.sqrt(jnp.float32(fan_in))
        w = jax.random.uniform(kw, (fan_in, fan_out), jnp.float32, -bound, bound)
        b = jax.random.uniform(kb, (1, fan_out), jnp.float32, -bound, bound)
        return w, b

    k1, k2, k3 = jax.random.split(key, 3)
    w1, b1 = linear(k1, state_size, hl1)
    w2, b2 = linear(k2, hl1, hl2)
    w3, b3 = linear(k3, hl2, action_size)
    return w1, b1, w2, b2, w3, b3


def _reference_forward_f32(x, w1, b1, w2, b2, w3, b3):
    h1 = jnp.maximum(x @ w1 + b1, 0.0)
    h2 = jnp.maximum(h1 @ w2 + b2, 0.0)
    return h2 @ w3 + b3


if __name__ == "__main__":
    # Small shapes consistent with QNetwork(state_size, action_size, hl1, hl2)
    batch, state_size, action_size, hl1, hl2 = 8, 16, 4, 32, 32

    key = jax.random.PRNGKey(0)
    k_params, k_x = jax.random.split(key)

    params = init_qnetwork_params(k_params, state_size, action_size, hl1, hl2)
    x = jax.random.normal(k_x, (batch, state_size), jnp.float32)

    out = qnetwork_forward(x, *params)
    out = jax.block_until_ready(out)

    ref = _reference_forward_f32(x, *params)
    assert out.shape == (batch, action_size)
    # bf16 MXU operands with fp32 accumulation -> loosened tolerance vs fp32 reference.
    assert jnp.allclose(out, ref, atol=5e-2, rtol=5e-2), (
        f"max abs err {jnp.max(jnp.abs(out - ref))}"
    )

    print("KERNEL_OK")
</pallas_src>

<mosaic_0001>
module attributes {stable_mosaic.version = 11 : i64} {
  func.func @_mlp_kernel(%arg0: i32, %arg1: memref<8x16xf32, #tpu.memory_space<vmem>>, %arg2: memref<16x32xbf16, #tpu.memory_space<vmem>>, %arg3: memref<1x32xf32, #tpu.memory_space<vmem>>, %arg4: memref<32x32xbf16, #tpu.memory_space<vmem>>, %arg5: memref<1x32xf32, #tpu.memory_space<vmem>>, %arg6: memref<32x128xbf16, #tpu.memory_space<vmem>>, %arg7: memref<1x128xf32, #tpu.memory_space<vmem>>, %arg8: memref<8x128xf32, #tpu.memory_space<vmem>>) attributes {dimension_semantics = [#tpu.dimension_semantics<parallel>], iteration_bounds = array<i64: 1>, scalar_prefetch = 0 : i64, scratch_operands = 0 : i64, tpu.core_type = #tpu.core_type<tc>, window_params = [{transform_indices = @transform_0, window_bounds = array<i64: 8, 16>}, {pipeline_mode = #tpu.pipeline_mode<synchronous>, transform_indices = @transform_1, window_bounds = array<i64: 16, 32>}, {pipeline_mode = #tpu.pipeline_mode<synchronous>, transform_indices = @transform_2, window_bounds = array<i64: 1, 32>}, {pipeline_mode = #tpu.pipeline_mode<synchronous>, transform_indices = @transform_3, window_bounds = array<i64: 32, 32>}, {pipeline_mode = #tpu.pipeline_mode<synchronous>, transform_indices = @transform_4, window_bounds = array<i64: 1, 32>}, {pipeline_mode = #tpu.pipeline_mode<synchronous>, transform_indices = @transform_5, window_bounds = array<i64: 32, 128>}, {pipeline_mode = #tpu.pipeline_mode<synchronous>, transform_indices = @transform_6, window_bounds = array<i64: 1, 128>}, {transform_indices = @transform_7, window_bounds = array<i64: 8, 128>}]} {
    %c0 = arith.constant 0 : index
    %c0_0 = arith.constant 0 : index
    %0 = vector.load %arg1[%c0, %c0_0] : memref<8x16xf32, #tpu.memory_space<vmem>>, vector<8x16xf32>
    %1 = arith.truncf %0 : vector<8x16xf32> to vector<8x16xbf16>
    %c0_1 = arith.constant 0 : index
    %c0_2 = arith.constant 0 : index
    %2 = vector.load %arg2[%c0_1, %c0_2] : memref<16x32xbf16, #tpu.memory_space<vmem>>, vector<16x32xbf16>
    %cst = arith.constant dense<0.000000e+00> : vector<8x32xf32>
    %3 = tpu.matmul %1, %2, %cst {dimension_numbers = #tpu.dot_dimension_numbers<[1], [0], [0], [1], [0, 0, 1, 1], [], []>} : vector<8x16xbf16>, vector<16x32xbf16>, vector<8x32xf32> -> vector<8x32xf32>
    %c0_3 = arith.constant 0 : index
    %c0_4 = arith.constant 0 : index
    %4 = vector.load %arg3[%c0_3, %c0_4] : memref<1x32xf32, #tpu.memory_space<vmem>>, vector<1x32xf32>
    %5 = vector.broadcast %4 : vector<1x32xf32> to vector<8x32xf32>
    %6 = arith.addf %3, %5 : vector<8x32xf32>
    %cst_5 = arith.constant 0.000000e+00 : f32
    %7 = vector.broadcast %cst_5 : f32 to vector<8x32xf32>
    %8 = arith.maximumf %6, %7 : vector<8x32xf32>
    %9 = arith.truncf %8 : vector<8x32xf32> to vector<8x32xbf16>
    %c0_6 = arith.constant 0 : index
    %c0_7 = arith.constant 0 : index
    %10 = vector.load %arg4[%c0_6, %c0_7] : memref<32x32xbf16, #tpu.memory_space<vmem>>, vector<32x32xbf16>
    %cst_8 = arith.constant dense<0.000000e+00> : vector<8x32xf32>
    %11 = tpu.matmul %9, %10, %cst_8 {dimension_numbers = #tpu.dot_dimension_numbers<[1], [0], [0], [1], [0, 0, 1, 1], [], []>} : vector<8x32xbf16>, vector<32x32xbf16>, vector<8x32xf32> -> vector<8x32xf32>
    %c0_9 = arith.constant 0 : index
    %c0_10 = arith.constant 0 : index
    %12 = vector.load %arg5[%c0_9, %c0_10] : memref<1x32xf32, #tpu.memory_space<vmem>>, vector<1x32xf32>
    %13 = vector.broadcast %12 : vector<1x32xf32> to vector<8x32xf32>
    %14 = arith.addf %11, %13 : vector<8x32xf32>
    %cst_11 = arith.constant 0.000000e+00 : f32
    %15 = vector.broadcast %cst_11 : f32 to vector<8x32xf32>
    %16 = arith.maximumf %14, %15 : vector<8x32xf32>
    %17 = arith.truncf %16 : vector<8x32xf32> to vector<8x32xbf16>
    %c0_12 = arith.constant 0 : index
    %c0_13 = arith.constant 0 : index
    %18 = vector.load %arg6[%c0_12, %c0_13] : memref<32x128xbf16, #tpu.memory_space<vmem>>, vector<32x128xbf16>
    %cst_14 = arith.constant dense<0.000000e+00> : vector<8x128xf32>
    %19 = tpu.matmul %17, %18, %cst_14 {dimension_numbers = #tpu.dot_dimension_numbers<[1], [0], [0], [1], [0, 0, 1, 1], [], []>} : vector<8x32xbf16>, vector<32x128xbf16>, vector<8x128xf32> -> vector<8x128xf32>
    %c0_15 = arith.constant 0 : index
    %c0_16 = arith.constant 0 : index
    %20 = vector.load %arg7[%c0_15, %c0_16] : memref<1x128xf32, #tpu.memory_space<vmem>>, vector<1x128xf32>
    %21 = vector.broadcast %20 : vector<1x128xf32> to vector<8x128xf32>
    %22 = arith.addf %19, %21 : vector<8x128xf32>
    %c0_17 = arith.constant 0 : index
    %c0_18 = arith.constant 0 : index
    %23 = vector.load %arg8[%c0_17, %c0_18] : memref<8x128xf32, #tpu.memory_space<vmem>>, vector<8x128xf32>
    tpu.vector_store %arg8[%c0_17, %c0_18], %22 {strides = array<i32>} : memref<8x128xf32, #tpu.memory_space<vmem>>, vector<8x128xf32>,
    return
  }
  func.func @transform_0(%arg0: i32) -> (i32, i32) {
    %c0_i32 = arith.constant 0 : i32
    %c0_i32_0 = arith.constant 0 : i32
    return %arg0, %c0_i32 : i32, i32
  }
  func.func @transform_1(%arg0: i32) -> (i32, i32) {
    %c0_i32 = arith.constant 0 : i32
    %c0_i32_0 = arith.constant 0 : i32
    %c0_i32_1 = arith.constant 0 : i32
    return %c0_i32, %c0_i32_0 : i32, i32
  }
  func.func @transform_2(%arg0: i32) -> (i32, i32) {
    %c0_i32 = arith.constant 0 : i32
    %c0_i32_0 = arith.constant 0 : i32
    %c0_i32_1 = arith.constant 0 : i32
    return %c0_i32, %c0_i32_0 : i32, i32
  }
  func.func @transform_3(%arg0: i32) -> (i32, i32) {
    %c0_i32 = arith.constant 0 : i32
    %c0_i32_0 = arith.constant 0 : i32
    %c0_i32_1 = arith.constant 0 : i32
    return %c0_i32, %c0_i32_0 : i32, i32
  }
  func.func @transform_4(%arg0: i32) -> (i32, i32) {
    %c0_i32 = arith.constant 0 : i32
    %c0_i32_0 = arith.constant 0 : i32
    %c0_i32_1 = arith.constant 0 : i32
    return %c0_i32, %c0_i32_0 : i32, i32
  }
  func.func @transform_5(%arg0: i32) -> (i32, i32) {
    %c0_i32 = arith.constant 0 : i32
    %c0_i32_0 = arith.constant 0 : i32
    %c0_i32_1 = arith.constant 0 : i32
    return %c0_i32, %c0_i32_0 : i32, i32
  }
  func.func @transform_6(%arg0: i32) -> (i32, i32) {
    %c0_i32 = arith.constant 0 : i32
    %c0_i32_0 = arith.constant 0 : i32
    %c0_i32_1 = arith.constant 0 : i32
    return %c0_i32, %c0_i32_0 : i32, i32
  }
  func.func @transform_7(%arg0: i32) -> (i32, i32) {
    %c0_i32 = arith.constant 0 : i32
    %c0_i32_0 = arith.constant 0 : i32
    return %arg0, %c0_i32 : i32, i32
  }
}

</mosaic_0001>

<llo_original>
// kernel: qnetwork_forward.1
$region0: #{qnetwork_forward.1}
  #allocation0 [shape = 'u32[]', space=smem, size = 0x4, offset = 0x4, fixed_abs, tag = 'smem constant byte address 0x4 - core index']
  #allocation1 [shape = 'u32[144,128]{1,0:T(1,128)}', space=vmem, size = 0x12000, scoped, tag = 'internal scratch']
  %s0 = inlined_call_operand.vmem [shape: f32[8,16], index: 0, kind: input, shape index: {}]
  %s1 = inlined_call_operand.vmem [shape: bf16[16,32], index: 1, kind: input, shape index: {}]
  %s2 = inlined_call_operand.vmem [shape: f32[1,32], index: 2, kind: input, shape index: {}]
  %s3 = inlined_call_operand.vmem [shape: bf16[32,32], index: 3, kind: input, shape index: {}]
  %s4 = inlined_call_operand.vmem [shape: f32[1,32], index: 4, kind: input, shape index: {}]
  %s5 = inlined_call_operand.vmem [shape: bf16[32,128], index: 5, kind: input, shape index: {}]
  %s6 = inlined_call_operand.vmem [shape: f32[1,128], index: 6, kind: input, shape index: {}]
  %s7 = inlined_call_operand.vmem [shape: f32[8,128], index: 7, kind: output, shape index: {}]
  %s8 = sld [smem:[#allocation0]]
  $region38: #{qnetwork_forward.1} parent=0
    _
  %s10 = ssub.s32 1, %s8
  %s11 = scalar_select 0, %s10, %s8
  // Predicated region
  $region2: #{qnetwork_forward.1} parent=0 // pred_check
    _
  $region3: #{qnetwork_forward.1} parent=0 // pred_check_branch
    %13 = sbr.rel (0) target = $region5
  $region4: #{qnetwork_forward.1} parent=0 // pred_region
    _
  $region5: #{qnetwork_forward.1} parent=0 // pred_fallthru
    _
  // Predicated region
  $region6: #{qnetwork_forward.1} parent=0 // pred_check
    _
  $region7: #{qnetwork_forward.1} parent=0 // pred_check_branch
    %15 = sbr.rel (0) target = $region9
  $region8: #{qnetwork_forward.1} parent=0 // pred_region
    _
  $region9: #{qnetwork_forward.1} parent=0 // pred_fallthru
    _
  // Predicated region
  $region10: #{qnetwork_forward.1} parent=0 // pred_check
    _
  $region11: #{qnetwork_forward.1} parent=0 // pred_check_branch
    %17 = sbr.rel (0) target = $region13
  $region12: #{qnetwork_forward.1} parent=0 // pred_region
    _
  $region13: #{qnetwork_forward.1} parent=0 // pred_fallthru
    _
  // Predicated region
  $region14: #{qnetwork_forward.1} parent=0 // pred_check
    _
  $region15: #{qnetwork_forward.1} parent=0 // pred_check_branch
    %19 = sbr.rel (0) target = $region17
  $region16: #{qnetwork_forward.1} parent=0 // pred_region
    _
  $region17: #{qnetwork_forward.1} parent=0 // pred_fallthru
    _
  // Predicated region
  $region18: #{qnetwork_forward.1} parent=0 // pred_check
    _
  $region19: #{qnetwork_forward.1} parent=0 // pred_check_branch
    %21 = sbr.rel (0) target = $region21
  $region20: #{qnetwork_forward.1} parent=0 // pred_region
    _
  $region21: #{qnetwork_forward.1} parent=0 // pred_fallthru
    _
  // Predicated region
  $region22: #{qnetwork_forward.1} parent=0 // pred_check
    _
  $region23: #{qnetwork_forward.1} parent=0 // pred_check_branch
    %23 = sbr.rel (0) target = $region25
  $region24: #{qnetwork_forward.1} parent=0 // pred_region
    _
  $region25: #{qnetwork_forward.1} parent=0 // pred_fallthru
    _
  // Predicated region
  $region26: #{qnetwork_forward.1} parent=0 // pred_check
    _
  $region27: #{qnetwork_forward.1} parent=0 // pred_check_branch
    %25 = sbr.rel (0) target = $region29
  $region28: #{qnetwork_forward.1} parent=0 // pred_region
    _
  $region29: #{qnetwork_forward.1} parent=0 // pred_fallthru
    _
  %v27 = vld [vmem:[%s0] sm:$0xff]
  %v28 = vpack.c.bf16 %v27, %v27
  %v29 = vld [vmem:[%s1] sm:$0xf]
  %v30 = vld [vmem:[%s1 + $0x4] sm:$0xf]
  %v31 = vld [vmem:[%s2] sm:$0x1]
  %v33 = vlaneseq
  %v34 = vshrl.u32 %v33, 7
  %v35 = vsub.s32 0, %v34
  %v36 = vrot.slane %v31, %v35
  %v40 = vunpack.c.l.b16 %v29
  %v41 = vunpack.c.l.b16 %v30
  %v42 = vpack.c.b16 %v41, %v40
  %vm44 = vcmask 130048
  %v46 = vsel %vm44, %v28, 0
  %48 = vmatprep.subr.bf16.mxu0 0
  %49 = vmatpush1.bf16.msra.mxu0 %v42
  %50 = vmatprep.subr.bf16.mxu0 0
  %51 = vmatpush1.bf16.msra.mxu0 0
  %52 = vmatprep.subr.bf16.mxu0 0
  %53 = vmatpush1.bf16.msra.mxu0 0
  %54 = vmatprep.subr.bf16.mxu0 0
  %55 = vmatpush1.bf16.msra.mxu0 0
  %56 = vmatprep.subr.bf16.mxu0 0
  %57 = vmatpush1.bf16.msra.mxu0 0
  %58 = vmatprep.subr.bf16.mxu0 0
  %59 = vmatpush1.bf16.msra.mxu0 0
  %60 = vmatprep.subr.bf16.mxu0 0
  %61 = vmatpush1.bf16.msra.mxu0 0
  %62 = vmatprep.subr.bf16.mxu0 0
  %63 = vmatpush1.bf16.msra.mxu0 0
  %64 = vmatprep.subr.bf16.mxu0 0
  %65 = vmatpush1.bf16.msra.mxu0 0
  %66 = vmatprep.subr.bf16.mxu0 0
  %67 = vmatpush1.bf16.msra.mxu0 0
  %68 = vmatprep.subr.bf16.mxu0 0
  %69 = vmatpush1.bf16.msra.mxu0 0
  %70 = vmatprep.subr.bf16.mxu0 0
  %71 = vmatpush1.bf16.msra.mxu0 0
  %72 = vmatprep.subr.bf16.mxu0 0
  %73 = vmatpush1.bf16.msra.mxu0 0
  %74 = vmatprep.subr.bf16.mxu0 0
  %75 = vmatpush1.bf16.msra.mxu0 0
  %76 = vmatprep.subr.bf16.mxu0 0
  %77 = vmatpush1.bf16.msra.mxu0 0
  %78 = vmatprep.subr.bf16.mxu0 0
  %79 = vmatpush1.bf16.msra.mxu0 0
  %80 = vmatprep.mubr.bf16.mxu0 0
  %81 = vmatmul.mubr.bf16.gmra.mrb[0].mxu0 %v46
  %v82 = vpop.f32.mrb[0].mxu0
  %v83 = vadd.f32 %v36, %v82
  %v84 = vpop.f32.mrb[0].mxu0
  %v85 = vpop.f32.mrb[0].mxu0
  %v86 = vpop.f32.mrb[0].mxu0
  %87 = vdwg.mxu0
  %v88 = vmax.f32 %v83, 0.0
  %v89 = vpack.c.bf16 %v88, %v88
  %v90 = vld [vmem:[%s3] sm:$0xf]
  %v91 = vld [vmem:[%s3 + $0x4] sm:$0xf]
  %v92 = vld [vmem:[%s3 + $0x8] sm:$0xf]
  %v93 = vld [vmem:[%s3 + $0xc] sm:$0xf]
  %v94 = vld [vmem:[%s4] sm:$0x1]
  %v96 = vlaneseq
  %v97 = vshrl.u32 %v96, 7
  %v98 = vsub.s32 0, %v97
  %v99 = vrot.slane %v94, %v98
  %v105 = vunpack.c.l.b16 %v90
  %v106 = vunpack.c.l.b16 %v91
  %v107 = vunpack.c.l.b16 %v92
  %v108 = vunpack.c.l.b16 %v93
  %v109 = vpack.c.b16 %v106, %v105
  %v110 = vpack.c.b16 %v108, %v107
  %vm113 = vcmask 261120
  %v115 = vsel %vm113, %v89, 0
  %117 = vmatprep.subr.bf16.mxu0 0
  %118 = vmatpush1.bf16.msra.mxu0 %v109
  %119 = vmatprep.subr.bf16.mxu0 0
  %120 = vmatpush1.bf16.msra.mxu0 %v110
  %121 = vmatprep.subr.bf16.mxu0 0
  %122 = vmatpush1.bf16.msra.mxu0 0
  %123 = vmatprep.subr.bf16.mxu0 0
  %124 = vmatpush1.bf16.msra.mxu0 0
  %125 = vmatprep.subr.bf16.mxu0 0
  %126 = vmatpush1.bf16.msra.mxu0 0
  %127 = vmatprep.subr.bf16.mxu0 0
  %128 = vmatpush1.bf16.msra.mxu0 0
  %129 = vmatprep.subr.bf16.mxu0 0
  %130 = vmatpush1.bf16.msra.mxu0 0
  %131 = vmatprep.subr.bf16.mxu0 0
  %132 = vmatpush1.bf16.msra.mxu0 0
  %133 = vmatprep.subr.bf16.mxu0 0
  %134 = vmatpush1.bf16.msra.mxu0 0
  %135 = vmatprep.subr.bf16.mxu0 0
  %136 = vmatpush1.bf16.msra.mxu0 0
  %137 = vmatprep.subr.bf16.mxu0 0
  %138 = vmatpush1.bf16.msra.mxu0 0
  %139 = vmatprep.subr.bf16.mxu0 0
  %140 = vmatpush1.bf16.msra.mxu0 0
  %141 = vmatprep.subr.bf16.mxu0 0
  %142 = vmatpush1.bf16.msra.mxu0 0
  %143 = vmatprep.subr.bf16.mxu0 0
  %144 = vmatpush1.bf16.msra.mxu0 0
  %145 = vmatprep.subr.bf16.mxu0 0
  %146 = vmatpush1.bf16.msra.mxu0 0
  %147 = vmatprep.subr.bf16.mxu0 0
  %148 = vmatpush1.bf16.msra.mxu0 0
  %149 = vmatprep.mubr.bf16.mxu0 0
  %150 = vmatmul.mubr.bf16.gmra.mrb[0].mxu0 %v115
  %v151 = vpop.f32.mrb[0].mxu0
  %v152 = vadd.f32 %v99, %v151
  %v153 = vpop.f32.mrb[0].mxu0
  %v154 = vpop.f32.mrb[0].mxu0
  %v155 = vpop.f32.mrb[0].mxu0
  %156 = vdwg.mxu0
  %v157 = vmax.f32 %v152, 0.0
  %v158 = vpack.c.bf16 %v157, %v157
  %v159 = vld [vmem:[%s5] sm:$0xf]
  %v160 = vld [vmem:[%s5 + $0x4] sm:$0xf]
  %v161 = vld [vmem:[%s5 + $0x8] sm:$0xf]
  %v162 = vld [vmem:[%s5 + $0xc] sm:$0xf]
  %v163 = vld [vmem:[%s6] sm:$0x1]
  %v165 = vlaneseq
  %v166 = vshrl.u32 %v165, 7
  %v167 = vsub.s32 0, %v166
  %v168 = vrot.slane %v163, %v167
  %v174 = vunpack.c.l.b16 %v159
  %v175 = vunpack.c.l.b16 %v160
  %v176 = vunpack.c.l.b16 %v161
  %v177 = vunpack.c.l.b16 %v162
  %v178 = vpack.c.b16 %v175, %v174
  %v179 = vpack.c.b16 %v177, %v176
  %v183 = vsel %vm113, %v158, 0
  %185 = vmatprep.subr.bf16.mxu0 0
  %186 = vmatpush1.bf16.msra.mxu0 %v178
  %187 = vmatprep.subr.bf16.mxu0 0
  %188 = vmatpush1.bf16.msra.mxu0 %v179
  %189 = vmatprep.subr.bf16.mxu0 0
  %190 = vmatpush1.bf16.msra.mxu0 0
  %191 = vmatprep.subr.bf16.mxu0 0
  %192 = vmatpush1.bf16.msra.mxu0 0
  %193 = vmatprep.subr.bf16.mxu0 0
  %194 = vmatpush1.bf16.msra.mxu0 0
  %195 = vmatprep.subr.bf16.mxu0 0
  %196 = vmatpush1.bf16.msra.mxu0 0
  %197 = vmatprep.subr.bf16.mxu0 0
  %198 = vmatpush1.bf16.msra.mxu0 0
  %199 = vmatprep.subr.bf16.mxu0 0
  %200 = vmatpush1.bf16.msra.mxu0 0
  %201 = vmatprep.subr.bf16.mxu0 0
  %202 = vmatpush1.bf16.msra.mxu0 0
  %203 = vmatprep.subr.bf16.mxu0 0
  %204 = vmatpush1.bf16.msra.mxu0 0
  %205 = vmatprep.subr.bf16.mxu0 0
  %206 = vmatpush1.bf16.msra.mxu0 0
  %207 = vmatprep.subr.bf16.mxu0 0
  %208 = vmatpush1.bf16.msra.mxu0 0
  %209 = vmatprep.subr.bf16.mxu0 0
  %210 = vmatpush1.bf16.msra.mxu0 0
  %211 = vmatprep.subr.bf16.mxu0 0
  %212 = vmatpush1.bf16.msra.mxu0 0
  %213 = vmatprep.subr.bf16.mxu0 0
  %214 = vmatpush1.bf16.msra.mxu0 0
  %215 = vmatprep.subr.bf16.mxu0 0
  %216 = vmatpush1.bf16.msra.mxu0 0
  %217 = vmatprep.mubr.bf16.mxu0 0
  %218 = vmatmul.mubr.bf16.gmra.mrb[0].mxu0 %v183
  %v219 = vpop.f32.mrb[0].mxu0
  %v220 = vadd.f32 %v168, %v219
  %v221 = vpop.f32.mrb[0].mxu0
  %v222 = vpop.f32.mrb[0].mxu0
  %v223 = vpop.f32.mrb[0].mxu0
  %224 = vdwg.mxu0
  %225 = vst [vmem:[%s7] sm:$0xff] %v220
  // Predicated region
  $region30: #{qnetwork_forward.1} parent=0 // pred_check
    _
  $region31: #{qnetwork_forward.1} parent=0 // pred_check_branch
    %227 = sbr.rel (0) target = $region33
  $region32: #{qnetwork_forward.1} parent=0 // pred_region
    _
  $region33: #{qnetwork_forward.1} parent=0 // pred_fallthru
    _
  // Predicated region
  $region34: #{qnetwork_forward.1} parent=0 // pred_check
    _
  $region35: #{qnetwork_forward.1} parent=0 // pred_check_branch
    %229 = sbr.rel (0) target = $region37
  $region36: #{qnetwork_forward.1} parent=0 // pred_region
    _
  $region37: #{qnetwork_forward.1} parent=0 // pred_fallthru
    _

</llo_original>
